<compile_context>
chip_gen: v7x
topology: tpu7x:2x2x1
jax: 0.10.0
libtpu: 0.0.40
codegen_flags: <defaults>
</compile_context>

<pallas_src>
import functools

import jax
import jax.numpy as jnp
from jax.experimental import pallas as pl
from jax.experimental.pallas import tpu as pltpu


# --------------------------------------------------------------------------- #
# In-kernel helpers
# --------------------------------------------------------------------------- #
def _recip(s):
    # EUP approximate reciprocal (separate VLIW slot) + one Newton–Raphson
    # refinement.  The NR step costs 2 VALU ops (noise-level here) and keeps
    # the softmax within ~1e-6 of exact division.
    r = pl.reciprocal(s, approx=True)
    return r * (2.0 - s * r)


def _softmax_last(z):
    # Row softmax (reduce along the lane axis), all in f32.
    m = jnp.max(z, axis=-1, keepdims=True)
    e = jnp.exp(z - m)
    return e * _recip(jnp.sum(e, axis=-1, keepdims=True))


def _episode_compute(x_f32, w_f32, n_way, k_eff):
    """Forward for one few-shot episode.

    x_f32: (M, D) f32 instance features, rows class-contiguous in groups of
           k_eff (PyTorch's .view(n_way, M // n_way, 768) assumption).
    w_f32: (N, D) f32 class prototype vectors.
    Returns (inst_probs (M, N) f32, cls_probs (N, n_way) f32).
    """
    M = x_f32.shape[0]

    # bf16 MXU operands / f32 accumulation; the casts ride idle VPU slots.
    x_bf = x_f32.astype(jnp.bfloat16)
    w_bf = w_f32.astype(jnp.bfloat16)

    # logits_for_instances = X @ W.T
    logits_inst = jax.lax.dot_general(
        x_bf, w_bf, (((1,), (1,)), ((), ())),
        preferred_element_type=jnp.float32)                       # (M, N) f32
    inst = _softmax_last(logits_inst)

    # ---- class path -------------------------------------------------------
    # Group-averaging matrix built in-kernel (no third input, no host kron):
    #   mean_mat[b, m] = 1/k  iff  row m belongs to class b  (b*k <= m < (b+1)*k)
    col = jax.lax.broadcasted_iota(jnp.int32, (n_way, M), 1)
    row = jax.lax.broadcasted_iota(jnp.int32, (n_way, M), 0)
    off = col - row * k_eff
    mean_mat = jnp.where((off >= 0) & (off < k_eff),
                         jnp.float32(1.0 / k_eff), jnp.float32(0.0))

    # class_means = mean_mat @ X   (f32, M-deep contraction — tiny MXU pass)
    class_means = jnp.dot(mean_mat, x_f32,
                          preferred_element_type=jnp.float32)     # (n_way, D)

    # logits_for_classes = W @ class_means.T, emitted directly as (N, n_way):
    # softmax is then a lane-axis reduce and no transpose is needed anywhere.
    logits_cls = jax.lax.dot_general(
        w_bf, class_means.astype(jnp.bfloat16), (((1,), (1,)), ((), ())),
        preferred_element_type=jnp.float32)                       # (N, n_way)
    cls = _softmax_last(logits_cls)
    return inst, cls


# --------------------------------------------------------------------------- #
# Kernels
# --------------------------------------------------------------------------- #
def _knowmp_kernel(x_ref, w_ref, inst_ref, cls_ref, *, n_way, k_eff):
    inst, cls = _episode_compute(x_ref[...], w_ref[...], n_way, k_eff)
    # N = 4 means masked 4-lane stores into a padded lane tile — accepted
    # consciously (tiny outputs).
    inst_ref[...] = inst
    cls_ref[...] = cls


def _knowmp_kernel_single(x_ref, w_ref, inst_ref):
    logits = jax.lax.dot_general(
        x_ref[...].astype(jnp.bfloat16), w_ref[...].astype(jnp.bfloat16),
        (((1,), (1,)), ((), ())), preferred_element_type=jnp.float32)
    inst_ref[...] = _softmax_last(logits)


def _cost_estimate(n_episodes, M, N, D, n_way):
    # instance matmul + mean matmul + class matmul; exps of both softmaxes.
    flops = n_episodes * (2 * M * D * N + 2 * n_way * M * D + 2 * N * D * n_way)
    transcendentals = n_episodes * (M * N + N * n_way)
    bytes_accessed = n_episodes * 4 * (M * D + N * D + M * N + N * n_way)
    return pl.CostEstimate(flops=int(flops),
                           transcendentals=int(transcendentals),
                           bytes_accessed=int(bytes_accessed))


# --------------------------------------------------------------------------- #
# Wrappers
# --------------------------------------------------------------------------- #
def knowmp_forward(inputs, W, n_way):
    """Pallas implementation of knowMP.forward(inputs, W) for one episode."""
    M, D = inputs.shape
    N, Dw = W.shape
    if D != Dw:
        raise ValueError(f"hidden-size mismatch: inputs D={D} vs W D={Dw}")
    if N != n_way:
        raise ValueError(f"W has {N} rows but n_way={n_way}")

    # No wrapper-side dtype conversions beyond ensuring f32 inputs; the
    # f32->bf16 casts happen inside the kernel.
    x = inputs if inputs.dtype == jnp.float32 else inputs.astype(jnp.float32)
    w = W if W.dtype == jnp.float32 else W.astype(jnp.float32)

    vmem = pl.BlockSpec(memory_space=pltpu.MemorySpace.VMEM)

    if M > 1:
        if M % n_way != 0:
            raise ValueError(f"M={M} not divisible by n_way={n_way}")
        k_eff = M // n_way
        kernel = functools.partial(_knowmp_kernel, n_way=n_way, k_eff=k_eff)
        inst, cls = pl.pallas_call(
            kernel,
            out_shape=(
                jax.ShapeDtypeStruct((M, N), jnp.float32),
                jax.ShapeDtypeStruct((N, n_way), jnp.float32),
            ),
            in_specs=[vmem, vmem],
            out_specs=(vmem, vmem),
            cost_estimate=_cost_estimate(1, M, N, D, n_way),
        )(x, w)
        return inst, cls
    else:
        inst = pl.pallas_call(
            _knowmp_kernel_single,
            out_shape=jax.ShapeDtypeStruct((M, N), jnp.float32),
            in_specs=[vmem, vmem],
            out_specs=vmem,
            cost_estimate=pl.CostEstimate(
                flops=2 * M * D * N, transcendentals=M * N,
                bytes_accessed=4 * (M * D + N * D + M * N)),
        )(x, w)
        return inst, inst


def knowmp_forward_batched(inputs, W, n_way):
    """Many episodes in one pallas_call.

    inputs: (E, M, D) per-episode instance features.
    W:      (E, N, D) per-episode prototype matrices.
    Returns (inst_probs (E, M, N), cls_probs (E, N, n_way)).
    Amortizes the fixed pallas_call / DMA-setup overhead over E episodes; the
    "parallel" grid axis lets v7x's two TensorCores split episodes.
    """
    E, M, D = inputs.shape
    E2, N, Dw = W.shape
    if E != E2 or D != Dw or N != n_way:
        raise ValueError("shape mismatch in batched knowMP forward")
    if M <= 1 or M % n_way != 0:
        raise ValueError(f"batched path needs M>1 and M%n_way==0, got M={M}")
    k_eff = M // n_way

    x = inputs if inputs.dtype == jnp.float32 else inputs.astype(jnp.float32)
    w = W if W.dtype == jnp.float32 else W.astype(jnp.float32)

    kernel = functools.partial(_knowmp_kernel, n_way=n_way, k_eff=k_eff)
    inst, cls = pl.pallas_call(
        kernel,
        grid=(E,),
        out_shape=(
            jax.ShapeDtypeStruct((E, M, N), jnp.float32),
            jax.ShapeDtypeStruct((E, N, n_way), jnp.float32),
        ),
        # Leading episode dim is squeezed (None) so the same kernel body is
        # shared with the gridless single-episode path.
        in_specs=[
            pl.BlockSpec((None, M, D), lambda e: (e, 0, 0)),
            pl.BlockSpec((None, N, D), lambda e: (e, 0, 0)),
        ],
        out_specs=(
            pl.BlockSpec((None, M, N), lambda e: (e, 0, 0)),
            pl.BlockSpec((None, N, n_way), lambda e: (e, 0, 0)),
        ),
        compiler_params=pltpu.CompilerParams(
            dimension_semantics=("parallel",)),
        cost_estimate=_cost_estimate(E, M, N, D, n_way),
    )(x, w)
    return inst, cls


# --------------------------------------------------------------------------- #
# Plain-JAX reference (mirrors the kernel's dtype policy: bf16 MXU operands,
# f32 accumulation, f32 class means).  NOTE: both kernel and reference differ
# from the PyTorch fp32 result by ~bf16 epsilon on the logits — stated policy.
# --------------------------------------------------------------------------- #
def _reference_forward(inputs, W, n_way):
    x32 = inputs.astype(jnp.float32)
    w32 = W.astype(jnp.float32)
    xb = x32.astype(jnp.bfloat16)
    wb = w32.astype(jnp.bfloat16)
    logits_inst = jax.lax.dot_general(
        xb, wb, (((1,), (1,)), ((), ())), preferred_element_type=jnp.float32)
    M, D = x32.shape
    if M > 1:
        k = M // n_way
        class_means = jnp.mean(x32.reshape(n_way, k, D), axis=1)
        logits_cls = jax.lax.dot_general(
            wb, class_means.astype(jnp.bfloat16), (((1,), (1,)), ((), ())),
            preferred_element_type=jnp.float32)                   # (N, n_way)
        return (jax.nn.softmax(logits_inst, axis=-1),
                jax.nn.softmax(logits_cls, axis=-1))
    p = jax.nn.softmax(logits_inst, axis=-1)
    return p, p


# --------------------------------------------------------------------------- #
# Self-test
# --------------------------------------------------------------------------- #
if __name__ == "__main__":
    # hidden_size = 768 is hard-coded in knowMP.forward via .view(..., 768);
    # n_way = 4, k_shot = 2  ->  M = 8 instances per episode.
    n_way, k_shot, hidden = 4, 2, 768
    M = n_way * k_shot

    key = jax.random.PRNGKey(0)
    k_x, k_w, k_b = jax.random.split(key, 3)
    inputs = jax.random.normal(k_x, (M, hidden), dtype=jnp.float32)
    W = jax.random.normal(k_w, (n_way, hidden), dtype=jnp.float32)
    W = W / jnp.linalg.norm(W, axis=-1, keepdims=True)   # mimics F.normalize

    # --- single episode, M > 1 branch ---
    inst, cls = knowmp_forward(inputs, W, n_way)
    jax.block_until_ready((inst, cls))
    assert inst.shape == (M, n_way)
    assert cls.shape == (n_way, n_way)
    r_inst, r_cls = _reference_forward(inputs, W, n_way)
    assert jnp.allclose(inst, r_inst, atol=1e-3, rtol=1e-3)
    assert jnp.allclose(cls, r_cls, atol=1e-3, rtol=1e-3)

    # --- single-instance branch (M == 1): instance softmax returned twice ---
    inst1, cls1 = knowmp_forward(inputs[:1], W, n_way)
    jax.block_until_ready((inst1, cls1))
    r1_inst, r1_cls = _reference_forward(inputs[:1], W, n_way)
    assert jnp.allclose(inst1, r1_inst, atol=1e-3, rtol=1e-3)
    assert jnp.allclose(cls1, r1_cls, atol=1e-3, rtol=1e-3)

    # --- episode-batched path (one pallas_call, grid over episodes) ---
    E = 2
    xs = jax.random.normal(k_b, (E, M, hidden), dtype=jnp.float32)
    Ws = jnp.stack([W, W[::-1]], axis=0)
    b_inst, b_cls = knowmp_forward_batched(xs, Ws, n_way)
    jax.block_until_ready((b_inst, b_cls))
    assert b_inst.shape == (E, M, n_way) and b_cls.shape == (E, n_way, n_way)
    for e in range(E):
        re_inst, re_cls = _reference_forward(xs[e], Ws[e], n_way)
        assert jnp.allclose(b_inst[e], re_inst, atol=1e-3, rtol=1e-3)
        assert jnp.allclose(b_cls[e], re_cls, atol=1e-3, rtol=1e-3)

    print("KERNEL_OK")
</pallas_src>

<mosaic_0001>
module attributes {stable_mosaic.version = 11 : i64} {
  func.func @_knowmp_kernel(%arg0: memref<8x768xf32, #tpu.memory_space<vmem>>, %arg1: memref<4x768xf32, #tpu.memory_space<vmem>>, %arg2: memref<8x4xf32, #tpu.memory_space<vmem>>, %arg3: memref<4x4xf32, #tpu.memory_space<vmem>>) attributes {dimension_semantics = [], scalar_prefetch = 0 : i64, scratch_operands = 0 : i64, tpu.core_type = #tpu.core_type<tc>} {
    %c0 = arith.constant 0 : index
    %c0_0 = arith.constant 0 : index
    %0 = vector.load %arg0[%c0, %c0_0] : memref<8x768xf32, #tpu.memory_space<vmem>>, vector<8x768xf32>
    %c0_1 = arith.constant 0 : index
    %c0_2 = arith.constant 0 : index
    %1 = vector.load %arg1[%c0_1, %c0_2] : memref<4x768xf32, #tpu.memory_space<vmem>>, vector<4x768xf32>
    %2 = arith.truncf %0 : vector<8x768xf32> to vector<8x768xbf16>
    %3 = arith.truncf %1 : vector<4x768xf32> to vector<4x768xbf16>
    %cst = arith.constant dense<0.000000e+00> : vector<8x4xf32>
    %4 = tpu.matmul %2, %3, %cst {dimension_numbers = #tpu.dot_dimension_numbers<[1], [1], [0], [0], [0, 0, 1, 0], [], []>} : vector<8x768xbf16>, vector<4x768xbf16>, vector<8x4xf32> -> vector<8x4xf32>
    %cst_3 = arith.constant dense<0xFF800000> : vector<8xf32>
    %5 = vector.multi_reduction <maximumf>, %4, %cst_3 [1] : vector<8x4xf32> to vector<8xf32>
    %6 = vector.shape_cast %5 : vector<8xf32> to vector<8x1xf32>
    %7 = vector.broadcast %6 : vector<8x1xf32> to vector<8x4xf32>
    %8 = arith.subf %4, %7 : vector<8x4xf32>
    %9 = math.exp %8 : vector<8x4xf32>
    %cst_4 = arith.constant dense<0.000000e+00> : vector<8xf32>
    %10 = vector.multi_reduction <add>, %9, %cst_4 [1] : vector<8x4xf32> to vector<8xf32>
    %11 = vector.shape_cast %10 : vector<8xf32> to vector<8x1xf32>
    %12 = tpu.reciprocal %11 {approx = true} : vector<8x1xf32> -> vector<8x1xf32>
    %13 = arith.mulf %11, %12 : vector<8x1xf32>
    %cst_5 = arith.constant 2.000000e+00 : f32
    %14 = vector.broadcast %cst_5 : f32 to vector<8x1xf32>
    %15 = arith.subf %14, %13 : vector<8x1xf32>
    %16 = arith.mulf %12, %15 : vector<8x1xf32>
    %17 = vector.broadcast %16 : vector<8x1xf32> to vector<8x4xf32>
    %18 = arith.mulf %9, %17 : vector<8x4xf32>
    %19 = tpu.iota {dimensions = array<i32: 1>} : vector<4x8xi32>
    %20 = tpu.iota {dimensions = array<i32: 0>} : vector<4x8xi32>
    %c2_i32 = arith.constant 2 : i32
    %21 = vector.broadcast %c2_i32 : i32 to vector<4x8xi32>
    %22 = arith.muli %20, %21 : vector<4x8xi32>
    %23 = arith.subi %19, %22 : vector<4x8xi32>
    %c0_i32 = arith.constant 0 : i32
    %24 = vector.broadcast %c0_i32 : i32 to vector<4x8xi32>
    %25 = arith.cmpi sge, %23, %24 : vector<4x8xi32>
    %c2_i32_6 = arith.constant 2 : i32
    %26 = vector.broadcast %c2_i32_6 : i32 to vector<4x8xi32>
    %27 = arith.cmpi slt, %23, %26 : vector<4x8xi32>
    %28 = arith.andi %25, %27 : vector<4x8xi1>
    %cst_7 = arith.constant 5.000000e-01 : f32
    %cst_8 = arith.constant 0.000000e+00 : f32
    %29 = vector.broadcast %cst_7 : f32 to vector<4x8xf32>
    %30 = vector.broadcast %cst_8 : f32 to vector<4x8xf32>
    %31 = arith.select %28, %29, %30 : vector<4x8xi1>, vector<4x8xf32>
    %cst_9 = arith.constant dense<0.000000e+00> : vector<4x768xf32>
    %32 = tpu.matmul %31, %0, %cst_9 {dimension_numbers = #tpu.dot_dimension_numbers<[1], [0], [0], [1], [0, 0, 1, 1], [], []>} : vector<4x8xf32>, vector<8x768xf32>, vector<4x768xf32> -> vector<4x768xf32>
    %33 = arith.truncf %32 : vector<4x768xf32> to vector<4x768xbf16>
    %cst_10 = arith.constant dense<0.000000e+00> : vector<4x4xf32>
    %34 = tpu.matmul %3, %33, %cst_10 {dimension_numbers = #tpu.dot_dimension_numbers<[1], [1], [0], [0], [0, 0, 1, 0], [], []>} : vector<4x768xbf16>, vector<4x768xbf16>, vector<4x4xf32> -> vector<4x4xf32>
    %cst_11 = arith.constant dense<0xFF800000> : vector<4xf32>
    %35 = vector.multi_reduction <maximumf>, %34, %cst_11 [1] : vector<4x4xf32> to vector<4xf32>
    %36 = vector.shape_cast %35 : vector<4xf32> to vector<4x1xf32>
    %37 = vector.broadcast %36 : vector<4x1xf32> to vector<4x4xf32>
    %38 = arith.subf %34, %37 : vector<4x4xf32>
    %39 = math.exp %38 : vector<4x4xf32>
    %cst_12 = arith.constant dense<0.000000e+00> : vector<4xf32>
    %40 = vector.multi_reduction <add>, %39, %cst_12 [1] : vector<4x4xf32> to vector<4xf32>
    %41 = vector.shape_cast %40 : vector<4xf32> to vector<4x1xf32>
    %42 = tpu.reciprocal %41 {approx = true} : vector<4x1xf32> -> vector<4x1xf32>
    %43 = arith.mulf %41, %42 : vector<4x1xf32>
    %cst_13 = arith.constant 2.000000e+00 : f32
    %44 = vector.broadcast %cst_13 : f32 to vector<4x1xf32>
    %45 = arith.subf %44, %43 : vector<4x1xf32>
    %46 = arith.mulf %42, %45 : vector<4x1xf32>
    %47 = vector.broadcast %46 : vector<4x1xf32> to vector<4x4xf32>
    %48 = arith.mulf %39, %47 : vector<4x4xf32>
    %c0_14 = arith.constant 0 : index
    %c0_15 = arith.constant 0 : index
    %49 = vector.load %arg2[%c0_14, %c0_15] : memref<8x4xf32, #tpu.memory_space<vmem>>, vector<8x4xf32>
    tpu.vector_store %arg2[%c0_14, %c0_15], %18 {strides = array<i32>} : memref<8x4xf32, #tpu.memory_space<vmem>>, vector<8x4xf32>,
    %c0_16 = arith.constant 0 : index
    %c0_17 = arith.constant 0 : index
    %50 = vector.load %arg3[%c0_16, %c0_17] : memref<4x4xf32, #tpu.memory_space<vmem>>, vector<4x4xf32>
    tpu.vector_store %arg3[%c0_16, %c0_17], %48 {strides = array<i32>} : memref<4x4xf32, #tpu.memory_space<vmem>>, vector<4x4xf32>,
    return
  }
}

</mosaic_0001>

<llo_original>
// kernel: tpu_custom_call.1
$region0: #{tpu_custom_call.1}
  #allocation0 [shape = 'u32[]', space=smem, size = 0x4, offset = 0x4, fixed_abs, tag = 'smem constant byte address 0x4 - core index']
  #allocation1 [shape = 'u32[144,128]{1,0:T(1,128)}', space=vmem, size = 0x12000, scoped, tag = 'internal scratch']
  %s0 = inlined_call_operand.hbm [shape: f32[8,768], index: 0, kind: input, shape index: {}]
  %s1 = inlined_call_operand.hbm [shape: f32[4,768], index: 1, kind: input, shape index: {}]
  %s2 = inlined_call_operand.vmem [shape: f32[8,4], index: 2, kind: output, shape index: {0}]
  %s3 = inlined_call_operand.hbm [shape: f32[4,4], index: 3, kind: output, shape index: {1}]
  %4 = xla_tuple %s2, %s3
  %s5 = sld [smem:[#allocation0]]
  $region34: #{tpu_custom_call.1} parent=0
    _
  %s7 = ssub.s32 1, %s5
  %s8 = scalar_select 0, %s7, %s5
  $region1: #{tpu_custom_call.1} parent=0
    #allocation2 [shape = 'u8[24576]{0}', space=vmem, size = 0x6000, scoped, tag = 'input window, operand 0, single buffered']
    #allocation3 [shape = 's32[1]{0}', space=sflag, size = 0x4, scoped, tag = 'scoped memory for tpu_custom_call.1']
    #allocation4 [shape = 's32[1]{0}', space=sflag, size = 0x4, scoped, tag = 'scoped memory for tpu_custom_call.1']
    #allocation5 [shape = 'u8[12288]{0}', space=vmem, size = 0x3000, scoped, tag = 'input window, operand 1, single buffered']
    #allocation6 [shape = 's32[1]{0}', space=sflag, size = 0x4, scoped, tag = 'scoped memory for tpu_custom_call.1']
    #allocation7 [shape = 'u8[2048]{0}', space=vmem, size = 0x800, scoped, tag = 'output window, operand 1, single buffered']
    %9 = vsyncpa [#allocation3], 0
    %10 = vsyncpa [#allocation6], 0
    %11 = vsyncpa [#allocation4], 0
    // Predicated region
    $region2: #{tpu_custom_call.1} parent=1 // pred_check
      _
    $region3: #{tpu_custom_call.1} parent=1 // pred_check_branch
      %13 = sbr.rel (0) target = $region5
    $region4: #{tpu_custom_call.1} parent=1 // pred_region
      %s15 = ssub.s32 768, 768
      %16 = vsyncadd [#allocation3], %s15
      %s18 = sshll.u32 [#allocation2], 4
      %s19 = int_to_ptr.vmem [resolvable:$true] %s18
      %21 = dma.hbm_to_vmem [thread:$0]  %s0, 768, %s19, [#allocation3]
    $region5: #{tpu_custom_call.1} parent=1 // pred_fallthru
      _
    // Predicated region
    $region6: #{tpu_custom_call.1} parent=1 // pred_check
      _
    $region7: #{tpu_custom_call.1} parent=1 // pred_check_branch
      %23 = sbr.rel (0) target = $region9
    $region8: #{tpu_custom_call.1} parent=1 // pred_region
      %s25 = ssub.s32 384, 384
      %26 = vsyncadd [#allocation6], %s25
      %s28 = sshll.u32 [#allocation5], 4
      %s29 = int_to_ptr.vmem [resolvable:$true] %s28
      %31 = dma.hbm_to_vmem [thread:$0]  %s1, 384, %s29, [#allocation6]
    $region9: #{tpu_custom_call.1} parent=1 // pred_fallthru
      _
    // Predicated region
    $region10: #{tpu_custom_call.1} parent=1 // pred_check
      _
    $region11: #{tpu_custom_call.1} parent=1 // pred_check_branch
      %33 = sbr.rel (0) target = $region13
    $region12: #{tpu_custom_call.1} parent=1 // pred_region
      %34 = dma.done [#allocation3], 768
    $region13: #{tpu_custom_call.1} parent=1 // pred_fallthru
      _
    // Predicated region
    $region14: #{tpu_custom_call.1} parent=1 // pred_check
      _
    $region15: #{tpu_custom_call.1} parent=1 // pred_check_branch
      %36 = sbr.rel (0) target = $region17
    $region16: #{tpu_custom_call.1} parent=1 // pred_region
      %37 = dma.done [#allocation6], 384
    $region17: #{tpu_custom_call.1} parent=1 // pred_fallthru
      _
    %v39 = vld [vmem:[#allocation2] sm:$0xff]
    %v40 = vld [vmem:[#allocation2 + $0x8] sm:$0xff]
    %v41 = vld [vmem:[#allocation2 + $0x10] sm:$0xff]
    %v42 = vld [vmem:[#allocation2 + $0x18] sm:$0xff]
    %v43 = vld [vmem:[#allocation2 + $0x20] sm:$0xff]
    %v44 = vld [vmem:[#allocation2 + $0x28] sm:$0xff]
    %v45 = vld [vmem:[#allocation5] sm:$0xff]
    %v46 = vld [vmem:[#allocation5 + $0x8] sm:$0xff]
    %v47 = vld [vmem:[#allocation5 + $0x10] sm:$0xff]
    %v48 = vpack.c.bf16 %v39, %v39
    %v49 = vpack.c.bf16 %v40, %v40
    %v50 = vpack.c.bf16 %v41, %v41
    %v51 = vpack.c.bf16 %v42, %v42
    %v52 = vpack.c.bf16 %v43, %v43
    %v53 = vpack.c.bf16 %v44, %v44
    %v57 = vcombine.high %v45, %v45
    %v58 = vcombine.high %v46, %v46
    %v59 = vcombine.high %v47, %v47
    %v63 = vpack.c.bf16 %v45, %v45
    %v64 = vpack.c.bf16 %v57, %v57
    %v65 = vpack.c.bf16 %v46, %v46
    %v66 = vpack.c.bf16 %v58, %v58
    %v67 = vpack.c.bf16 %v47, %v47
    %v68 = vpack.c.bf16 %v59, %v59
    %69 = vmatprep.subr.bf16.mxu0 %v64
    %70 = vmatpush1.bf16.xpose.msra.mxu0 %v63
    %71 = vmatprep.subr.bf16.mxu0 0
    %72 = vmatpush1.bf16.xpose.msra.mxu0 0
    %73 = vmatprep.subr.bf16.mxu0 0
    %74 = vmatpush1.bf16.xpose.msra.mxu0 0
    %75 = vmatprep.subr.bf16.mxu0 0
    %76 = vmatpush1.bf16.xpose.msra.mxu0 0
    %77 = vmatprep.subr.bf16.mxu0 0
    %78 = vmatpush1.bf16.xpose.msra.mxu0 0
    %79 = vmatprep.subr.bf16.mxu0 0
    %80 = vmatpush1.bf16.xpose.msra.mxu0 0
    %81 = vmatprep.subr.bf16.mxu0 0
    %82 = vmatpush1.bf16.xpose.msra.mxu0 0
    %83 = vmatprep.subr.bf16.mxu0 0
    %84 = vmatpush1.bf16.xpose.msra.mxu0 0
    %85 = vmatprep.subr.bf16.mxu0 0
    %86 = vmatpush1.bf16.xpose.msra.mxu0 0
    %87 = vmatprep.subr.bf16.mxu0 0
    %88 = vmatpush1.bf16.xpose.msra.mxu0 0
    %89 = vmatprep.subr.bf16.mxu0 0
    %90 = vmatpush1.bf16.xpose.msra.mxu0 0
    %91 = vmatprep.subr.bf16.mxu0 0
    %92 = vmatpush1.bf16.xpose.msra.mxu0 0
    %93 = vmatprep.subr.bf16.mxu0 0
    %94 = vmatpush1.bf16.xpose.msra.mxu0 0
    %95 = vmatprep.subr.bf16.mxu0 0
    %96 = vmatpush1.bf16.xpose.msra.mxu0 0
    %97 = vmatprep.subr.bf16.mxu0 0
    %98 = vmatpush1.bf16.xpose.msra.mxu0 0
    %99 = vmatprep.subr.bf16.mxu0 0
    %100 = vmatpush1.bf16.xpose.msra.mxu0 0
    %101 = vmatprep.mubr.bf16.mxu0 %v49
    %102 = vmatmul.mubr.bf16.gmra.mrb[0].mxu0 %v48
    %v103 = vpop.f32.mrb[0].mxu0
    %v104 = vadd.f32 0.0, %v103
    %v105 = vpop.f32.mrb[0].mxu0
    %v106 = vpop.f32.mrb[0].mxu0
    %v107 = vpop.f32.mrb[0].mxu0
    %108 = vdwg.mxu0
    %109 = vmatprep.subr.bf16.mxu0 %v66
    %110 = vmatpush1.bf16.xpose.msra.mxu0 %v65
    %111 = vmatprep.subr.bf16.mxu0 0
    %112 = vmatpush1.bf16.xpose.msra.mxu0 0
    %113 = vmatprep.subr.bf16.mxu0 0
    %114 = vmatpush1.bf16.xpose.msra.mxu0 0
    %115 = vmatprep.subr.bf16.mxu0 0
    %116 = vmatpush1.bf16.xpose.msra.mxu0 0
    %117 = vmatprep.subr.bf16.mxu0 0
    %118 = vmatpush1.bf16.xpose.msra.mxu0 0
    %119 = vmatprep.subr.bf16.mxu0 0
    %120 = vmatpush1.bf16.xpose.msra.mxu0 0
    %121 = vmatprep.subr.bf16.mxu0 0
    %122 = vmatpush1.bf16.xpose.msra.mxu0 0
    %123 = vmatprep.subr.bf16.mxu0 0
    %124 = vmatpush1.bf16.xpose.msra.mxu0 0
    %125 = vmatprep.subr.bf16.mxu0 0
    %126 = vmatpush1.bf16.xpose.msra.mxu0 0
    %127 = vmatprep.subr.bf16.mxu0 0
    %128 = vmatpush1.bf16.xpose.msra.mxu0 0
    %129 = vmatprep.subr.bf16.mxu0 0
    %130 = vmatpush1.bf16.xpose.msra.mxu0 0
    %131 = vmatprep.subr.bf16.mxu0 0
    %132 = vmatpush1.bf16.xpose.msra.mxu0 0
    %133 = vmatprep.subr.bf16.mxu0 0
    %134 = vmatpush1.bf16.xpose.msra.mxu0 0
    %135 = vmatprep.subr.bf16.mxu0 0
    %136 = vmatpush1.bf16.xpose.msra.mxu0 0
    %137 = vmatprep.subr.bf16.mxu0 0
    %138 = vmatpush1.bf16.xpose.msra.mxu0 0
    %139 = vmatprep.subr.bf16.mxu0 0
    %140 = vmatpush1.bf16.xpose.msra.mxu0 0
    %141 = vmatprep.mubr.bf16.mxu0 %v51
    %142 = vmatmul.mubr.bf16.gmra.mrb[0].mxu0 %v50
    %v143 = vpop.f32.mrb[0].mxu0
    %v144 = vadd.f32 %v104, %v143
    %v145 = vpop.f32.mrb[0].mxu0
    %v146 = vpop.f32.mrb[0].mxu0
    %v147 = vpop.f32.mrb[0].mxu0
    %148 = vdwg.mxu0
    %149 = vmatprep.subr.bf16.mxu0 %v68
    %150 = vmatpush1.bf16.xpose.msra.mxu0 %v67
    %151 = vmatprep.subr.bf16.mxu0 0
    %152 = vmatpush1.bf16.xpose.msra.mxu0 0
    %153 = vmatprep.subr.bf16.mxu0 0
    %154 = vmatpush1.bf16.xpose.msra.mxu0 0
    %155 = vmatprep.subr.bf16.mxu0 0
    %156 = vmatpush1.bf16.xpose.msra.mxu0 0
    %157 = vmatprep.subr.bf16.mxu0 0
    %158 = vmatpush1.bf16.xpose.msra.mxu0 0
    %159 = vmatprep.subr.bf16.mxu0 0
    %160 = vmatpush1.bf16.xpose.msra.mxu0 0
    %161 = vmatprep.subr.bf16.mxu0 0
    %162 = vmatpush1.bf16.xpose.msra.mxu0 0
    %163 = vmatprep.subr.bf16.mxu0 0
    %164 = vmatpush1.bf16.xpose.msra.mxu0 0
    %165 = vmatprep.subr.bf16.mxu0 0
    %166 = vmatpush1.bf16.xpose.msra.mxu0 0
    %167 = vmatprep.subr.bf16.mxu0 0
    %168 = vmatpush1.bf16.xpose.msra.mxu0 0
    %169 = vmatprep.subr.bf16.mxu0 0
    %170 = vmatpush1.bf16.xpose.msra.mxu0 0
    %171 = vmatprep.subr.bf16.mxu0 0
    %172 = vmatpush1.bf16.xpose.msra.mxu0 0
    %173 = vmatprep.subr.bf16.mxu0 0
    %174 = vmatpush1.bf16.xpose.msra.mxu0 0
    %175 = vmatprep.subr.bf16.mxu0 0
    %176 = vmatpush1.bf16.xpose.msra.mxu0 0
    %177 = vmatprep.subr.bf16.mxu0 0
    %178 = vmatpush1.bf16.xpose.msra.mxu0 0
    %179 = vmatprep.subr.bf16.mxu0 0
    %180 = vmatpush1.bf16.xpose.msra.mxu0 0
    %181 = vmatprep.mubr.bf16.mxu0 %v53
    %182 = vmatmul.mubr.bf16.gmra.mrb[0].mxu0 %v52
    %v183 = vpop.f32.mrb[0].mxu0
    %v184 = vadd.f32 %v144, %v183
    %v185 = vpop.f32.mrb[0].mxu0
    %v186 = vpop.f32.mrb[0].mxu0
    %v187 = vpop.f32.mrb[0].mxu0
    %188 = vdwg.mxu0
    %vm189 = vcmask 31744
    %v190 = vsel %vm189, %v184, -inf
    %191 = vmax.xlane.f32.xlu0 %v190
    %v192 = vpop.xlane.xlu0 %191
    %v193 = vsub.f32 %v184, %v192
    %v194 = vmul.f32 %v193, 1.442695
    %v195 = vpow.pop %v194
    %v196 = vsel %vm189, %v195, 0.0
    %197 = vadd.xlane.f32.xlu0 %v196
    %v198 = vpop.xlane.xlu0 %197
    %v199 = vrcp.pop %v198
    %v200 = vmul.f32 %v198, %v199
    %v201 = vsub.f32 2.0, %v200
    %v202 = vmul.f32 %v199, %v201
    %v203 = vmul.f32 %v195, %v202
    %v204 = vlaneseq
    %v205 = vand.u32 %v204, 127
    %v206 = vlaneseq
    %v207 = vshrl.u32 %v206, 7
    %v208 = vmul.u32 %v207, 2
    %v209 = vsub.s32 %v205, %v208
    %vm210 = vcmp.ge.s32.totalorder %v209, 0
    %vm211 = vcmp.lt.s32.totalorder %v209, 2
    %vm212 = vmand %vm210, %vm211
    %v213 = vsel %vm212, 0.5, 0.0
    %vm214 = vcmask 64512
    %v216 = vsel %vm214, %v213, 0
    %218 = vmatprep.subr.mxu0 %v40
    %219 = vmatpush1.msra.mxu0 %v39
    %220 = vmatprep.subr.mxu0 0.0
    %221 = vmatpush1.msra.mxu0 0.0
    %222 = vmatprep.subr.mxu0 0.0
    %223 = vmatpush1.msra.mxu0 0.0
    %224 = vmatprep.subr.mxu0 0.0
    %225 = vmatpush1.msra.mxu0 0.0
    %226 = vmatprep.subr.mxu0 0.0
    %227 = vmatpush1.msra.mxu0 0.0
    %228 = vmatprep.subr.mxu0 0.0
    %229 = vmatpush1.msra.mxu0 0.0
    %230 = vmatprep.subr.mxu0 0.0
    %231 = vmatpush1.msra.mxu0 0.0
    %232 = vmatprep.subr.mxu0 0.0
    %233 = vmatpush1.msra.mxu0 0.0
    %234 = vmatprep.subr.mxu0 0.0
    %235 = vmatpush1.msra.mxu0 0.0
    %236 = vmatprep.subr.mxu0 0.0
    %237 = vmatpush1.msra.mxu0 0.0
    %238 = vmatprep.subr.mxu0 0.0
    %239 = vmatpush1.msra.mxu0 0.0
    %240 = vmatprep.subr.mxu0 0.0
    %241 = vmatpush1.msra.mxu0 0.0
    %242 = vmatprep.subr.mxu0 0.0
    %243 = vmatpush1.msra.mxu0 0.0
    %244 = vmatprep.subr.mxu0 0.0
    %245 = vmatpush1.msra.mxu0 0.0
    %246 = vmatprep.subr.mxu0 0.0
    %247 = vmatpush1.msra.mxu0 0.0
    %248 = vmatprep.subr.mxu0 0.0
    %249 = vmatpush1.msra.mxu0 0.0
    %250 = vmatprep.subr.mxu0 0.0
    %251 = vmatpush1.msra.mxu0 0.0
    %252 = vmatprep.subr.mxu0 0.0
    %253 = vmatpush1.msra.mxu0 0.0
    %254 = vmatprep.subr.mxu0 0.0
    %255 = vmatpush1.msra.mxu0 0.0
    %256 = vmatprep.subr.mxu0 0.0
    %257 = vmatpush1.msra.mxu0 0.0
    %258 = vmatprep.subr.mxu0 0.0
    %259 = vmatpush1.msra.mxu0 0.0
    %260 = vmatprep.subr.mxu0 0.0
    %261 = vmatpush1.msra.mxu0 0.0
    %262 = vmatprep.subr.mxu0 0.0
    %263 = vmatpush1.msra.mxu0 0.0
    %264 = vmatprep.subr.mxu0 0.0
    %265 = vmatpush1.msra.mxu0 0.0
    %266 = vmatprep.subr.mxu0 0.0
    %267 = vmatpush1.msra.mxu0 0.0
    %268 = vmatprep.subr.mxu0 0.0
    %269 = vmatpush1.msra.mxu0 0.0
    %270 = vmatprep.subr.mxu0 0.0
    %271 = vmatpush1.msra.mxu0 0.0
    %272 = vmatprep.subr.mxu0 0.0
    %273 = vmatpush1.msra.mxu0 0.0
    %274 = vmatprep.subr.mxu0 0.0
    %275 = vmatpush1.msra.mxu0 0.0
    %276 = vmatprep.subr.mxu0 0.0
    %277 = vmatpush1.msra.mxu0 0.0
    %278 = vmatprep.subr.mxu0 0.0
    %279 = vmatpush1.msra.mxu0 0.0
    %280 = vmatprep.subr.mxu0 0.0
    %281 = vmatpush1.msra.mxu0 0.0
    %282 = vmatprep.mubr.f32.mxu0 0.0
    %283 = vmatmul.mubr.f32.gmra.mrb[0].mxu0 %v216
    %v284 = vpop.f32.mrb[0].mxu0
    %v285 = vadd.f32 0.0, %v284
    %v286 = vpop.f32.mrb[0].mxu0
    %v287 = vadd.f32 0.0, %v286
    %288 = vdwg.mxu0
    %289 = vmatprep.subr.mxu0 %v42
    %290 = vmatpush1.msra.mxu0 %v41
    %291 = vmatprep.subr.mxu0 0.0
    %292 = vmatpush1.msra.mxu0 0.0
    %293 = vmatprep.subr.mxu0 0.0
    %294 = vmatpush1.msra.mxu0 0.0
    %295 = vmatprep.subr.mxu0 0.0
    %296 = vmatpush1.msra.mxu0 0.0
    %297 = vmatprep.subr.mxu0 0.0
    %298 = vmatpush1.msra.mxu0 0.0
    %299 = vmatprep.subr.mxu0 0.0
    %300 = vmatpush1.msra.mxu0 0.0
    %301 = vmatprep.subr.mxu0 0.0
    %302 = vmatpush1.msra.mxu0 0.0
    %303 = vmatprep.subr.mxu0 0.0
    %304 = vmatpush1.msra.mxu0 0.0
    %305 = vmatprep.subr.mxu0 0.0
    %306 = vmatpush1.msra.mxu0 0.0
    %307 = vmatprep.subr.mxu0 0.0
    %308 = vmatpush1.msra.mxu0 0.0
    %309 = vmatprep.subr.mxu0 0.0
    %310 = vmatpush1.msra.mxu0 0.0
    %311 = vmatprep.subr.mxu0 0.0
    %312 = vmatpush1.msra.mxu0 0.0
    %313 = vmatprep.subr.mxu0 0.0
    %314 = vmatpush1.msra.mxu0 0.0
    %315 = vmatprep.subr.mxu0 0.0
    %316 = vmatpush1.msra.mxu0 0.0
    %317 = vmatprep.subr.mxu0 0.0
    %318 = vmatpush1.msra.mxu0 0.0
    %319 = vmatprep.subr.mxu0 0.0
    %320 = vmatpush1.msra.mxu0 0.0
    %321 = vmatprep.subr.mxu0 0.0
    %322 = vmatpush1.msra.mxu0 0.0
    %323 = vmatprep.subr.mxu0 0.0
    %324 = vmatpush1.msra.mxu0 0.0
    %325 = vmatprep.subr.mxu0 0.0
    %326 = vmatpush1.msra.mxu0 0.0
    %327 = vmatprep.subr.mxu0 0.0
    %328 = vmatpush1.msra.mxu0 0.0
    %329 = vmatprep.subr.mxu0 0.0
    %330 = vmatpush1.msra.mxu0 0.0
    %331 = vmatprep.subr.mxu0 0.0
    %332 = vmatpush1.msra.mxu0 0.0
    %333 = vmatprep.subr.mxu0 0.0
    %334 = vmatpush1.msra.mxu0 0.0
    %335 = vmatprep.subr.mxu0 0.0
    %336 = vmatpush1.msra.mxu0 0.0
    %337 = vmatprep.subr.mxu0 0.0
    %338 = vmatpush1.msra.mxu0 0.0
    %339 = vmatprep.subr.mxu0 0.0
    %340 = vmatpush1.msra.mxu0 0.0
    %341 = vmatprep.subr.mxu0 0.0
    %342 = vmatpush1.msra.mxu0 0.0
    %343 = vmatprep.subr.mxu0 0.0
    %344 = vmatpush1.msra.mxu0 0.0
    %345 = vmatprep.subr.mxu0 0.0
    %346 = vmatpush1.msra.mxu0 0.0
    %347 = vmatprep.subr.mxu0 0.0
    %348 = vmatpush1.msra.mxu0 0.0
    %349 = vmatprep.subr.mxu0 0.0
    %350 = vmatpush1.msra.mxu0 0.0
    %351 = vmatprep.subr.mxu0 0.0
    %352 = vmatpush1.msra.mxu0 0.0
    %353 = vmatprep.mubr.f32.mxu0 0.0
    %354 = vmatmul.mubr.f32.gmra.mrb[0].mxu0 %v216
    %v355 = vpop.f32.mrb[0].mxu0
    %v356 = vadd.f32 0.0, %v355
    %v357 = vpop.f32.mrb[0].mxu0
    %v358 = vadd.f32 0.0, %v357
    %359 = vdwg.mxu0
    %360 = vmatprep.subr.mxu0 %v44
    %361 = vmatpush1.msra.mxu0 %v43
    %362 = vmatprep.subr.mxu0 0.0
    %363 = vmatpush1.msra.mxu0 0.0
    %364 = vmatprep.subr.mxu0 0.0
    %365 = vmatpush1.msra.mxu0 0.0
    %366 = vmatprep.subr.mxu0 0.0
    %367 = vmatpush1.msra.mxu0 0.0
    %368 = vmatprep.subr.mxu0 0.0
    %369 = vmatpush1.msra.mxu0 0.0
    %370 = vmatprep.subr.mxu0 0.0
    %371 = vmatpush1.msra.mxu0 0.0
    %372 = vmatprep.subr.mxu0 0.0
    %373 = vmatpush1.msra.mxu0 0.0
    %374 = vmatprep.subr.mxu0 0.0
    %375 = vmatpush1.msra.mxu0 0.0
    %376 = vmatprep.subr.mxu0 0.0
    %377 = vmatpush1.msra.mxu0 0.0
    %378 = vmatprep.subr.mxu0 0.0
    %379 = vmatpush1.msra.mxu0 0.0
    %380 = vmatprep.subr.mxu0 0.0
    %381 = vmatpush1.msra.mxu0 0.0
    %382 = vmatprep.subr.mxu0 0.0
    %383 = vmatpush1.msra.mxu0 0.0
    %384 = vmatprep.subr.mxu0 0.0
    %385 = vmatpush1.msra.mxu0 0.0
    %386 = vmatprep.subr.mxu0 0.0
    %387 = vmatpush1.msra.mxu0 0.0
    %388 = vmatprep.subr.mxu0 0.0
    %389 = vmatpush1.msra.mxu0 0.0
    %390 = vmatprep.subr.mxu0 0.0
    %391 = vmatpush1.msra.mxu0 0.0
    %392 = vmatprep.subr.mxu0 0.0
    %393 = vmatpush1.msra.mxu0 0.0
    %394 = vmatprep.subr.mxu0 0.0
    %395 = vmatpush1.msra.mxu0 0.0
    %396 = vmatprep.subr.mxu0 0.0
    %397 = vmatpush1.msra.mxu0 0.0
    %398 = vmatprep.subr.mxu0 0.0
    %399 = vmatpush1.msra.mxu0 0.0
    %400 = vmatprep.subr.mxu0 0.0
    %401 = vmatpush1.msra.mxu0 0.0
    %402 = vmatprep.subr.mxu0 0.0
    %403 = vmatpush1.msra.mxu0 0.0
    %404 = vmatprep.subr.mxu0 0.0
    %405 = vmatpush1.msra.mxu0 0.0
    %406 = vmatprep.subr.mxu0 0.0
    %407 = vmatpush1.msra.mxu0 0.0
    %408 = vmatprep.subr.mxu0 0.0
    %409 = vmatpush1.msra.mxu0 0.0
    %410 = vmatprep.subr.mxu0 0.0
    %411 = vmatpush1.msra.mxu0 0.0
    %412 = vmatprep.subr.mxu0 0.0
    %413 = vmatpush1.msra.mxu0 0.0
    %414 = vmatprep.subr.mxu0 0.0
    %415 = vmatpush1.msra.mxu0 0.0
    %416 = vmatprep.subr.mxu0 0.0
    %417 = vmatpush1.msra.mxu0 0.0
    %418 = vmatprep.subr.mxu0 0.0
    %419 = vmatpush1.msra.mxu0 0.0
    %420 = vmatprep.subr.mxu0 0.0
    %421 = vmatpush1.msra.mxu0 0.0
    %422 = vmatprep.subr.mxu0 0.0
    %423 = vmatpush1.msra.mxu0 0.0
    %424 = vmatprep.mubr.f32.mxu0 0.0
    %425 = vmatmul.mubr.f32.gmra.mrb[0].mxu0 %v216
    %v426 = vpop.f32.mrb[0].mxu0
    %v427 = vadd.f32 0.0, %v426
    %v428 = vpop.f32.mrb[0].mxu0
    %v429 = vadd.f32 0.0, %v428
    %430 = vdwg.mxu0
    %v431 = vpack.c.bf16 %v285, %v285
    %v432 = vpack.c.bf16 %v287, %v287
    %v433 = vpack.c.bf16 %v356, %v356
    %v434 = vpack.c.bf16 %v358, %v358
    %v435 = vpack.c.bf16 %v427, %v427
    %v436 = vpack.c.bf16 %v429, %v429
    %437 = vmatprep.subr.bf16.mxu0 %v432
    %438 = vmatpush1.bf16.xpose.msra.mxu0 %v431
    %439 = vmatprep.subr.bf16.mxu0 0
    %440 = vmatpush1.bf16.xpose.msra.mxu0 0
    %441 = vmatprep.subr.bf16.mxu0 0
    %442 = vmatpush1.bf16.xpose.msra.mxu0 0
    %443 = vmatprep.subr.bf16.mxu0 0
    %444 = vmatpush1.bf16.xpose.msra.mxu0 0
    %445 = vmatprep.subr.bf16.mxu0 0
    %446 = vmatpush1.bf16.xpose.msra.mxu0 0
    %447 = vmatprep.subr.bf16.mxu0 0
    %448 = vmatpush1.bf16.xpose.msra.mxu0 0
    %449 = vmatprep.subr.bf16.mxu0 0
    %450 = vmatpush1.bf16.xpose.msra.mxu0 0
    %451 = vmatprep.subr.bf16.mxu0 0
    %452 = vmatpush1.bf16.xpose.msra.mxu0 0
    %453 = vmatprep.subr.bf16.mxu0 0
    %454 = vmatpush1.bf16.xpose.msra.mxu0 0
    %455 = vmatprep.subr.bf16.mxu0 0
    %456 = vmatpush1.bf16.xpose.msra.mxu0 0
    %457 = vmatprep.subr.bf16.mxu0 0
    %458 = vmatpush1.bf16.xpose.msra.mxu0 0
    %459 = vmatprep.subr.bf16.mxu0 0
    %460 = vmatpush1.bf16.xpose.msra.mxu0 0
    %461 = vmatprep.subr.bf16.mxu0 0
    %462 = vmatpush1.bf16.xpose.msra.mxu0 0
    %463 = vmatprep.subr.bf16.mxu0 0
    %464 = vmatpush1.bf16.xpose.msra.mxu0 0
    %465 = vmatprep.subr.bf16.mxu0 0
    %466 = vmatpush1.bf16.xpose.msra.mxu0 0
    %467 = vmatprep.subr.bf16.mxu0 0
    %468 = vmatpush1.bf16.xpose.msra.mxu0 0
    %469 = vmatprep.mubr.bf16.mxu0 %v64
    %470 = vmatmul.mubr.bf16.gmra.mrb[0].mxu0 %v63
    %v471 = vpop.f32.mrb[0].mxu0
    %v472 = vadd.f32 0.0, %v471
    %v473 = vpop.f32.mrb[0].mxu0
    %v474 = vpop.f32.mrb[0].mxu0
    %v475 = vpop.f32.mrb[0].mxu0
    %476 = vdwg.mxu0
    %477 = vmatprep.subr.bf16.mxu0 %v434
    %478 = vmatpush1.bf16.xpose.msra.mxu0 %v433
    %479 = vmatprep.subr.bf16.mxu0 0
    %480 = vmatpush1.bf16.xpose.msra.mxu0 0
    %481 = vmatprep.subr.bf16.mxu0 0
    %482 = vmatpush1.bf16.xpose.msra.mxu0 0
    %483 = vmatprep.subr.bf16.mxu0 0
    %484 = vmatpush1.bf16.xpose.msra.mxu0 0
    %485 = vmatprep.subr.bf16.mxu0 0
    %486 = vmatpush1.bf16.xpose.msra.mxu0 0
    %487 = vmatprep.subr.bf16.mxu0 0
    %488 = vmatpush1.bf16.xpose.msra.mxu0 0
    %489 = vmatprep.subr.bf16.mxu0 0
    %490 = vmatpush1.bf16.xpose.msra.mxu0 0
    %491 = vmatprep.subr.bf16.mxu0 0
    %492 = vmatpush1.bf16.xpose.msra.mxu0 0
    %493 = vmatprep.subr.bf16.mxu0 0
    %494 = vmatpush1.bf16.xpose.msra.mxu0 0
    %495 = vmatprep.subr.bf16.mxu0 0
    %496 = vmatpush1.bf16.xpose.msra.mxu0 0
    %497 = vmatprep.subr.bf16.mxu0 0
    %498 = vmatpush1.bf16.xpose.msra.mxu0 0
    %499 = vmatprep.subr.bf16.mxu0 0
    %500 = vmatpush1.bf16.xpose.msra.mxu0 0
    %501 = vmatprep.subr.bf16.mxu0 0
    %502 = vmatpush1.bf16.xpose.msra.mxu0 0
    %503 = vmatprep.subr.bf16.mxu0 0
    %504 = vmatpush1.bf16.xpose.msra.mxu0 0
    %505 = vmatprep.subr.bf16.mxu0 0
    %506 = vmatpush1.bf16.xpose.msra.mxu0 0
    %507 = vmatprep.subr.bf16.mxu0 0
    %508 = vmatpush1.bf16.xpose.msra.mxu0 0
    %509 = vmatprep.mubr.bf16.mxu0 %v66
    %510 = vmatmul.mubr.bf16.gmra.mrb[0].mxu0 %v65
    %v511 = vpop.f32.mrb[0].mxu0
    %v512 = vadd.f32 %v472, %v511
    %v513 = vpop.f32.mrb[0].mxu0
    %v514 = vpop.f32.mrb[0].mxu0
    %v515 = vpop.f32.mrb[0].mxu0
    %516 = vdwg.mxu0
    %517 = vmatprep.subr.bf16.mxu0 %v436
    %518 = vmatpush1.bf16.xpose.msra.mxu0 %v435
    %519 = vmatprep.subr.bf16.mxu0 0
    %520 = vmatpush1.bf16.xpose.msra.mxu0 0
    %521 = vmatprep.subr.bf16.mxu0 0
    %522 = vmatpush1.bf16.xpose.msra.mxu0 0
    %523 = vmatprep.subr.bf16.mxu0 0
    %524 = vmatpush1.bf16.xpose.msra.mxu0 0
    %525 = vmatprep.subr.bf16.mxu0 0
    %526 = vmatpush1.bf16.xpose.msra.mxu0 0
    %527 = vmatprep.subr.bf16.mxu0 0
    %528 = vmatpush1.bf16.xpose.msra.mxu0 0
    %529 = vmatprep.subr.bf16.mxu0 0
    %530 = vmatpush1.bf16.xpose.msra.mxu0 0
    %531 = vmatprep.subr.bf16.mxu0 0
    %532 = vmatpush1.bf16.xpose.msra.mxu0 0
    %533 = vmatprep.subr.bf16.mxu0 0
    %534 = vmatpush1.bf16.xpose.msra.mxu0 0
    %535 = vmatprep.subr.bf16.mxu0 0
    %536 = vmatpush1.bf16.xpose.msra.mxu0 0
    %537 = vmatprep.subr.bf16.mxu0 0
    %538 = vmatpush1.bf16.xpose.msra.mxu0 0
    %539 = vmatprep.subr.bf16.mxu0 0
    %540 = vmatpush1.bf16.xpose.msra.mxu0 0
    %541 = vmatprep.subr.bf16.mxu0 0
    %542 = vmatpush1.bf16.xpose.msra.mxu0 0
    %543 = vmatprep.subr.bf16.mxu0 0
    %544 = vmatpush1.bf16.xpose.msra.mxu0 0
    %545 = vmatprep.subr.bf16.mxu0 0
    %546 = vmatpush1.bf16.xpose.msra.mxu0 0
    %547 = vmatprep.subr.bf16.mxu0 0
    %548 = vmatpush1.bf16.xpose.msra.mxu0 0
    %549 = vmatprep.mubr.bf16.mxu0 %v68
    %550 = vmatmul.mubr.bf16.gmra.mrb[0].mxu0 %v67
    %v551 = vpop.f32.mrb[0].mxu0
    %v552 = vadd.f32 %v512, %v551
    %v553 = vpop.f32.mrb[0].mxu0
    %v554 = vpop.f32.mrb[0].mxu0
    %v555 = vpop.f32.mrb[0].mxu0
    %556 = vdwg.mxu0
    %vm557 = vcmask 27648
    %v558 = vsel %vm557, %v552, -inf
    %559 = vmax.xlane.f32.xlu0 %v558
    %v560 = vpop.xlane.xlu0 %559
    %v561 = vsub.f32 %v552, %v560
    %v562 = vmul.f32 %v561, 1.442695
    %v563 = vpow.pop %v562
    %v564 = vsel %vm557, %v563, 0.0
    %565 = vadd.xlane.f32.xlu0 %v564
    %v566 = vpop.xlane.xlu0 %565
    %v567 = vrcp.pop %v566
    %v568 = vmul.f32 %v566, %v567
    %v569 = vsub.f32 2.0, %v568
    %v570 = vmul.f32 %v567, %v569
    %v571 = vmul.f32 %v563, %v570
    %572 = vst.msk [vmem:[%s2] sm:$0xff] %vm189, %v203
    %573 = vst.msk [vmem:[#allocation7] sm:$0xf] %vm557, %v571
    // Predicated region
    $region18: #{tpu_custom_call.1} parent=1 // pred_check
      _
    $region19: #{tpu_custom_call.1} parent=1 // pred_check_branch
      %575 = sbr.rel (0) target = $region21
    $region20: #{tpu_custom_call.1} parent=1 // pred_region
      _
    $region21: #{tpu_custom_call.1} parent=1 // pred_fallthru
      _
    // Predicated region
    $region22: #{tpu_custom_call.1} parent=1 // pred_check
      _
    $region23: #{tpu_custom_call.1} parent=1 // pred_check_branch
      %577 = sbr.rel (0) target = $region25
    $region24: #{tpu_custom_call.1} parent=1 // pred_region
      %s579 = ssub.s32 64, 64
      %580 = vsyncadd [#allocation4], %s579
      %s582 = sshll.u32 [#allocation7], 4
      %s583 = int_to_ptr.vmem [resolvable:$true] %s582
      %585 = dma.vmem_to_hbm [thread:$0]  %s583, 64, %s3, [#allocation4]
    $region25: #{tpu_custom_call.1} parent=1 // pred_fallthru
      _
    // Predicated region
    $region26: #{tpu_custom_call.1} parent=1 // pred_check
      _
    $region27: #{tpu_custom_call.1} parent=1 // pred_check_branch
      %587 = sbr.rel (0) target = $region29
    $region28: #{tpu_custom_call.1} parent=1 // pred_region
      _
    $region29: #{tpu_custom_call.1} parent=1 // pred_fallthru
      _
    // Predicated region
    $region30: #{tpu_custom_call.1} parent=1 // pred_check
      _
    $region31: #{tpu_custom_call.1} parent=1 // pred_check_branch
      %589 = sbr.rel (0) target = $region33
    $region32: #{tpu_custom_call.1} parent=1 // pred_region
      %590 = dma.done [#allocation4], 64
    $region33: #{tpu_custom_call.1} parent=1 // pred_fallthru
      _
    %591 = vsyncpa [#allocation3], 1
    %592 = vsyncpa [#allocation6], 1
    %593 = vsyncpa [#allocation4], 1

</llo_original>
